<compile_context>
chip_gen: v7x
topology: tpu7x:2x2x1
jax: 0.10.0
libtpu: 0.0.40
codegen_flags: <defaults>
</compile_context>

<pallas_src>
import functools
import math

import jax
import jax.numpy as jnp
from jax import lax
from jax.experimental import pallas as pl
from jax.experimental.pallas import tpu as pltpu

_LANES = 128                     # vreg lane width
_MASK_VALUE = -1e30              # finite "-inf" (avoids inf-inf NaN paths)
_VMEM_LIMIT = 32 * 1024 * 1024   # safe scoped VMEM cap on v5e/v6e/v7x


def _fit_tile(dim, pref, multiple):
    """Largest tile <= pref that divides `dim` and is a multiple of `multiple`.

    Full-dimension blocks are always legal, so dim <= pref returns dim.
    """
    if dim <= pref:
        return dim
    if pref % multiple == 0 and dim % pref == 0:
        return pref
    t = (pref // multiple) * multiple
    while t >= multiple:
        if dim % t == 0:
            return t
        t -= multiple
    # TODO(synk): pad the array instead of falling back to a full-dim block.
    return dim


# ----------------------------------------------------------------------------
# Kernel 1: tiled fused linear  y = x @ W + b   (used for c_attn and c_proj)
# ----------------------------------------------------------------------------
def _linear_kernel_single_k(x_ref, w_ref, b_ref, o_ref):
    # K fits in one tile: no fp32 scratch round trip, dot + bias + cast + store.
    acc = jnp.dot(x_ref[...].astype(jnp.bfloat16),
                  w_ref[...].astype(jnp.bfloat16),
                  preferred_element_type=jnp.float32)
    o_ref[...] = (acc + b_ref[...].astype(jnp.float32)).astype(o_ref.dtype)


def _linear_kernel_multi_k(x_ref, w_ref, b_ref, o_ref, acc_ref):
    @pl.when(pl.program_id(2) == 0)
    def _init():
        acc_ref[...] = jnp.zeros(acc_ref.shape, acc_ref.dtype)

    acc_ref[...] += jnp.dot(x_ref[...].astype(jnp.bfloat16),
                            w_ref[...].astype(jnp.bfloat16),
                            preferred_element_type=jnp.float32)

    @pl.when(pl.program_id(2) == pl.num_programs(2) - 1)
    def _finalize():
        o_ref[...] = (acc_ref[...] + b_ref[...].astype(jnp.float32)).astype(o_ref.dtype)


def linear_pallas(x2d, w, b, *, out_dtype=None, tm=512, tn=1024, tk=512):
    """x2d: (M, K), w: (K, N), b: (N,) -> (M, N) in out_dtype (default x dtype)."""
    M, K = x2d.shape
    K2, N = w.shape
    assert K == K2
    out_dtype = out_dtype or x2d.dtype
    tm = _fit_tile(M, tm, 8)       # sublane dim
    tn = _fit_tile(N, tn, 128)     # lane dim (lane-dense output stores)
    tk = _fit_tile(K, tk, 128)
    b2d = b.reshape(1, N)
    in_itemsize = jnp.dtype(x2d.dtype).itemsize
    cost = pl.CostEstimate(
        flops=2 * M * N * K,
        transcendentals=0,
        bytes_accessed=int((M * K + K * N + N) * in_itemsize
                           + M * N * jnp.dtype(out_dtype).itemsize))
    cparams = dict(vmem_limit_bytes=_VMEM_LIMIT)

    if K == tk:
        # Single reduction step (true for c_attn / c_proj at small C).
        return pl.pallas_call(
            _linear_kernel_single_k,
            out_shape=jax.ShapeDtypeStruct((M, N), out_dtype),
            grid=(M // tm, N // tn),
            in_specs=[
                pl.BlockSpec((tm, tk), lambda i, j: (i, 0)),
                pl.BlockSpec((tk, tn), lambda i, j: (0, j)),
                pl.BlockSpec((1, tn), lambda i, j: (0, j)),
            ],
            out_specs=pl.BlockSpec((tm, tn), lambda i, j: (i, j)),
            compiler_params=pltpu.CompilerParams(
                dimension_semantics=("parallel", "parallel"), **cparams),
            cost_estimate=cost,
        )(x2d, w, b2d)

    return pl.pallas_call(
        _linear_kernel_multi_k,
        out_shape=jax.ShapeDtypeStruct((M, N), out_dtype),
        grid=(M // tm, N // tn, K // tk),
        in_specs=[
            pl.BlockSpec((tm, tk), lambda i, j, k: (i, k)),
            pl.BlockSpec((tk, tn), lambda i, j, k: (k, j)),
            pl.BlockSpec((1, tn), lambda i, j, k: (0, j)),
        ],
        out_specs=pl.BlockSpec((tm, tn), lambda i, j, k: (i, j)),
        scratch_shapes=[pltpu.VMEM((tm, tn), jnp.float32)],
        compiler_params=pltpu.CompilerParams(
            dimension_semantics=("parallel", "parallel", "arbitrary"), **cparams),
        cost_estimate=cost,
    )(x2d, w, b2d)


# ----------------------------------------------------------------------------
# Kernel 2: flash-style causal attention, heads packed in the lane dimension.
# q, k, v, out are all (B, T, C); each grid step processes one
# (batch, q-tile, kv-tile) for ALL heads.
# ----------------------------------------------------------------------------
def _flash_attn_kernel(q_ref, k_ref, v_ref, o_ref, acc_ref, m_ref, l_ref, *, n_head):
    qi = pl.program_id(1)
    kv = pl.program_id(2)
    tq, C = q_ref.shape
    tk = k_ref.shape[0]
    Dh = C // n_head
    scale = 1.0 / math.sqrt(Dh)

    @pl.when(kv == 0)
    def _init():
        m_ref[...] = jnp.full(m_ref.shape, _MASK_VALUE, m_ref.dtype)
        l_ref[...] = jnp.zeros(l_ref.shape, l_ref.dtype)
        acc_ref[...] = jnp.zeros(acc_ref.shape, acc_ref.dtype)

    # NOTE: static Python loop is fine for small n_head (4 here); switch to
    # lax.fori_loop(..., unroll=True) if n_head grows past ~8 (vreg pressure).
    def attend(mask):
        for h in range(n_head):
            cols = slice(h * Dh, (h + 1) * Dh)
            # bf16 operands into the MXU, fp32 accumulate; 1/sqrt(Dh) folded
            # into the (small) q tile rather than the (tq, tk) score matrix.
            q_h = (q_ref[:, cols] * scale).astype(jnp.bfloat16)
            k_h = k_ref[:, cols].astype(jnp.bfloat16)
            v_h = v_ref[:, cols].astype(jnp.bfloat16)
            s = lax.dot_general(q_h, k_h, (((1,), (1,)), ((), ())),
                                preferred_element_type=jnp.float32)   # (tq, tk)
            if mask is not None:
                s = jnp.where(mask, s, _MASK_VALUE)

            m_prev = m_ref[h]                         # (tq, 128) lane-replicated
            l_prev = l_ref[h]                         # (tq, 128) lane-replicated
            s_max = jnp.max(s, axis=-1, keepdims=True)          # (tq, 1)
            m_new = jnp.maximum(m_prev, s_max)                  # (tq, 128)
            alpha = jnp.exp(m_prev - m_new)                     # (tq, 128)
            p = jnp.exp(s - m_new[:, :1])                       # (tq, tk)
            # Dense (unmasked) lane-replicated stores for the running stats.
            l_ref[h] = alpha * l_prev + jnp.sum(p, axis=-1, keepdims=True)
            m_ref[h] = m_new

            pv = jnp.dot(p.astype(jnp.bfloat16), v_h,
                         preferred_element_type=jnp.float32)    # (tq, Dh)
            a_cols = alpha[:, :Dh] if Dh <= _LANES else alpha[:, :1]
            acc_ref[:, cols] = a_cols * acc_ref[:, cols] + pv

    needed = kv * tk <= qi * tq + (tq - 1)        # tile not fully above diagonal
    full_vis = kv * tk + (tk - 1) <= qi * tq      # tile fully below diagonal

    @pl.when(jnp.logical_and(needed, full_vis))
    def _unmasked():                               # fast path: no iota / select
        attend(None)

    @pl.when(jnp.logical_and(needed, jnp.logical_not(full_vis)))
    def _masked():                                 # diagonal-straddling tiles only
        row = qi * tq + lax.broadcasted_iota(jnp.int32, (tq, tk), 0)
        col = kv * tk + lax.broadcasted_iota(jnp.int32, (tq, tk), 1)
        attend(col <= row)

    @pl.when(kv == pl.num_programs(2) - 1)
    def _finalize():
        for h in range(n_head):
            cols = slice(h * Dh, (h + 1) * Dh)
            inv_l = 1.0 / l_ref[h]                 # exact; once per q tile
            i_cols = inv_l[:, :Dh] if Dh <= _LANES else inv_l[:, :1]
            o_ref[:, cols] = (acc_ref[:, cols] * i_cols).astype(o_ref.dtype)


def causal_flash_attention(q, k, v, n_head, *, tq=512, tk=256):
    """q, k, v: (B, T, C) with heads packed along C -> (B, T, C)."""
    B, T, C = q.shape
    assert C % n_head == 0
    tq = _fit_tile(T, tq, 8)
    tk = _fit_tile(T, tk, 8)
    grid = (B, T // tq, T // tk)

    def q_map(b, i, j):
        return (b, i, 0)

    def kv_map(b, i, j):
        # Clamp above-diagonal (fully masked) KV tiles to the last tile actually
        # needed for this q tile: the block index repeats, so the pipeline skips
        # the redundant HBM fetch (compute is skipped separately by pl.when).
        return (b, jnp.minimum(j, (i * tq + tq - 1) // tk), 0)

    itemsize = jnp.dtype(q.dtype).itemsize
    cost = pl.CostEstimate(
        flops=2 * B * T * T * C,                 # ~QK^T + PV after causal skip
        transcendentals=B * n_head * T * T // 2,
        bytes_accessed=int(4 * B * T * C * itemsize))
    kernel = functools.partial(_flash_attn_kernel, n_head=n_head)
    return pl.pallas_call(
        kernel,
        out_shape=jax.ShapeDtypeStruct((B, T, C), q.dtype),
        grid=grid,
        in_specs=[
            pl.BlockSpec((None, tq, C), q_map),
            pl.BlockSpec((None, tk, C), kv_map),
            pl.BlockSpec((None, tk, C), kv_map),
        ],
        out_specs=pl.BlockSpec((None, tq, C), q_map),
        scratch_shapes=[
            pltpu.VMEM((tq, C), jnp.float32),               # acc, all heads, lane-dense
            pltpu.VMEM((n_head, tq, _LANES), jnp.float32),  # running max, lane-replicated
            pltpu.VMEM((n_head, tq, _LANES), jnp.float32),  # running denom, lane-replicated
        ],
        compiler_params=pltpu.CompilerParams(
            dimension_semantics=("parallel", "parallel", "arbitrary"),
            vmem_limit_bytes=_VMEM_LIMIT),
        cost_estimate=cost,
    )(q, k, v)


# ----------------------------------------------------------------------------
# Full MultiHeadAttention forward
# ----------------------------------------------------------------------------
def multi_head_attention(x, params, n_head):
    B, T, C = x.shape
    # c_attn: (B*T, C) @ (C, 3C) + bias -> bf16 qkv (halves its HBM traffic).
    qkv = linear_pallas(x.reshape(B * T, C), params["w_attn"], params["b_attn"],
                        out_dtype=jnp.bfloat16)
    qkv = qkv.reshape(B, T, 3 * C)
    # Contiguous last-dim slices only — no head split/merge transposes anywhere.
    q = qkv[:, :, :C]
    k = qkv[:, :, C:2 * C]
    v = qkv[:, :, 2 * C:]
    y = causal_flash_attention(q, k, v, n_head)     # (B, T, C) bf16, heads packed
    # c_proj (+ resid_dropout = identity at p=0 / eval); output back in x.dtype.
    y = linear_pallas(y.reshape(B * T, C), params["w_proj"], params["b_proj"],
                      out_dtype=x.dtype)
    return y.reshape(B, T, C)


# ----------------------------------------------------------------------------
# Pure-JAX reference (mirrors the PyTorch forward) for correctness checks
# ----------------------------------------------------------------------------
def reference_mha(x, params, n_head):
    B, T, C = x.shape
    Dh = C // n_head
    qkv = x @ params["w_attn"] + params["b_attn"]
    q, k, v = jnp.split(qkv, 3, axis=2)
    q = q.reshape(B, T, n_head, Dh).transpose(0, 2, 1, 3)
    k = k.reshape(B, T, n_head, Dh).transpose(0, 2, 1, 3)
    v = v.reshape(B, T, n_head, Dh).transpose(0, 2, 1, 3)
    s = jnp.einsum("bhqd,bhkd->bhqk", q, k) / math.sqrt(Dh)
    mask = jnp.tril(jnp.ones((T, T), dtype=bool))
    s = jnp.where(mask, s, -jnp.inf)
    p = jax.nn.softmax(s, axis=-1)
    y = jnp.einsum("bhqk,bhkd->bhqd", p, v)
    y = y.transpose(0, 2, 1, 3).reshape(B, T, C)
    return y @ params["w_proj"] + params["b_proj"]


def _make_params(key, C):
    k_wa, k_ba, k_wp, k_bp = jax.random.split(key, 4)
    return {
        # stored as (in, out) == transpose of torch Linear weight (out, in)
        "w_attn": 0.02 * jax.random.normal(k_wa, (C, 3 * C), dtype=jnp.float32),
        "b_attn": 0.01 * jax.random.normal(k_ba, (3 * C,), dtype=jnp.float32),
        "w_proj": 0.02 * jax.random.normal(k_wp, (C, C), dtype=jnp.float32),
        "b_proj": 0.01 * jax.random.normal(k_bp, (C,), dtype=jnp.float32),
    }


def _rel_err(y, y_ref):
    return float(jnp.max(jnp.abs(y - y_ref)) / (jnp.max(jnp.abs(y_ref)) + 1e-9))


if __name__ == "__main__":
    # --- Small demo consistent with the module (n_embd % n_head == 0) ---------
    B, T, C, n_head = 2, 8, 32, 4
    key = jax.random.PRNGKey(0)
    k_x, k_p = jax.random.split(key, 2)
    x = jax.random.normal(k_x, (B, T, C), dtype=jnp.float32)
    params = _make_params(k_p, C)

    y = jax.block_until_ready(multi_head_attention(x, params, n_head))
    y_ref = reference_mha(x, params, n_head)
    assert y.shape == (B, T, C)
    # bf16 MXU operands (fp32 accumulate) -> compare at 2e-2 relative.
    r1 = _rel_err(y, y_ref)
    assert r1 < 2e-2, r1

    # --- Larger shape: tiled grid, KV DMA clamp, unmasked fast path, tq != tk -
    B2, T2, C2, H2 = 2, 1024, 256, 4
    k_x2, k_p2 = jax.random.split(jax.random.PRNGKey(1), 2)
    x2 = jax.random.normal(k_x2, (B2, T2, C2), dtype=jnp.float32)
    params2 = _make_params(k_p2, C2)

    y2 = jax.block_until_ready(multi_head_attention(x2, params2, H2))
    y2_ref = reference_mha(x2, params2, H2)
    assert y2.shape == (B2, T2, C2)
    r2 = _rel_err(y2, y2_ref)
    assert r2 < 2e-2, r2

    print("KERNEL_OK")
</pallas_src>

<mosaic_0001>
module attributes {stable_mosaic.version = 11 : i64} {
  func.func @_linear_kernel_single_k(%arg0: i32, %arg1: i32, %arg2: memref<16x32xf32, #tpu.memory_space<vmem>>, %arg3: memref<32x96xf32, #tpu.memory_space<vmem>>, %arg4: memref<1x96xf32, #tpu.memory_space<vmem>>, %arg5: memref<16x96xbf16, #tpu.memory_space<vmem>>) attributes {dimension_semantics = [#tpu.dimension_semantics<parallel>, #tpu.dimension_semantics<parallel>], iteration_bounds = array<i64: 1, 1>, scalar_prefetch = 0 : i64, scratch_operands = 0 : i64, tpu.core_type = #tpu.core_type<tc>, window_params = [{transform_indices = @transform_0, window_bounds = array<i64: 16, 32>}, {transform_indices = @transform_1, window_bounds = array<i64: 32, 96>}, {transform_indices = @transform_2, window_bounds = array<i64: 1, 96>}, {transform_indices = @transform_3, window_bounds = array<i64: 16, 96>}]} {
    %c0 = arith.constant 0 : index
    %c0_0 = arith.constant 0 : index
    %0 = vector.load %arg2[%c0, %c0_0] : memref<16x32xf32, #tpu.memory_space<vmem>>, vector<16x32xf32>
    %1 = arith.truncf %0 : vector<16x32xf32> to vector<16x32xbf16>
    %c0_1 = arith.constant 0 : index
    %c0_2 = arith.constant 0 : index
    %2 = vector.load %arg3[%c0_1, %c0_2] : memref<32x96xf32, #tpu.memory_space<vmem>>, vector<32x96xf32>
    %3 = arith.truncf %2 : vector<32x96xf32> to vector<32x96xbf16>
    %cst = arith.constant dense<0.000000e+00> : vector<16x96xf32>
    %4 = tpu.matmul %1, %3, %cst {dimension_numbers = #tpu.dot_dimension_numbers<[1], [0], [0], [1], [0, 0, 1, 1], [], []>} : vector<16x32xbf16>, vector<32x96xbf16>, vector<16x96xf32> -> vector<16x96xf32>
    %c0_3 = arith.constant 0 : index
    %c0_4 = arith.constant 0 : index
    %5 = vector.load %arg4[%c0_3, %c0_4] : memref<1x96xf32, #tpu.memory_space<vmem>>, vector<1x96xf32>
    %6 = vector.broadcast %5 : vector<1x96xf32> to vector<16x96xf32>
    %7 = arith.addf %4, %6 : vector<16x96xf32>
    %8 = arith.truncf %7 : vector<16x96xf32> to vector<16x96xbf16>
    %c0_5 = arith.constant 0 : index
    %c0_6 = arith.constant 0 : index
    %9 = vector.load %arg5[%c0_5, %c0_6] : memref<16x96xbf16, #tpu.memory_space<vmem>>, vector<16x96xbf16>
    tpu.vector_store %arg5[%c0_5, %c0_6], %8 {strides = array<i32>} : memref<16x96xbf16, #tpu.memory_space<vmem>>, vector<16x96xbf16>,
    return
  }
  func.func @transform_0(%arg0: i32, %arg1: i32) -> (i32, i32) {
    %c0_i32 = arith.constant 0 : i32
    %c0_i32_0 = arith.constant 0 : i32
    return %arg0, %c0_i32 : i32, i32
  }
  func.func @transform_1(%arg0: i32, %arg1: i32) -> (i32, i32) {
    %c0_i32 = arith.constant 0 : i32
    %c0_i32_0 = arith.constant 0 : i32
    return %c0_i32, %arg1 : i32, i32
  }
  func.func @transform_2(%arg0: i32, %arg1: i32) -> (i32, i32) {
    %c0_i32 = arith.constant 0 : i32
    %c0_i32_0 = arith.constant 0 : i32
    return %c0_i32, %arg1 : i32, i32
  }
  func.func @transform_3(%arg0: i32, %arg1: i32) -> (i32, i32) {
    %c0_i32 = arith.constant 0 : i32
    return %arg0, %arg1 : i32, i32
  }
}

</mosaic_0001>

<llo_original>
// kernel: tpu_custom_call.1
$region0: #{tpu_custom_call.1}
  #allocation0 [shape = 'u32[]', space=smem, size = 0x4, offset = 0x4, fixed_abs, tag = 'smem constant byte address 0x4 - core index']
  #allocation1 [shape = 'u32[144,128]{1,0:T(1,128)}', space=vmem, size = 0x12000, scoped, tag = 'internal scratch']
  %s0 = inlined_call_operand.hbm [shape: f32[16,32], index: 0, kind: input, shape index: {}]
  %s1 = inlined_call_operand.hbm [shape: f32[32,96], index: 1, kind: input, shape index: {}]
  %s2 = inlined_call_operand.vmem [shape: f32[1,96], index: 2, kind: input, shape index: {}]
  %s3 = inlined_call_operand.hbm [shape: bf16[16,96], index: 3, kind: output, shape index: {}]
  %s4 = sld [smem:[#allocation0]]
  $region30: #{tpu_custom_call.1} parent=0
    _
  %s6 = ssub.s32 1, %s4
  %s7 = scalar_select 0, %s6, %s4
  $region1: #{tpu_custom_call.1} parent=0
    #allocation2 [shape = 'u8[8192]{0}', space=vmem, size = 0x2000, scoped, tag = 'input window, operand 0, single buffered']
    #allocation3 [shape = 's32[1]{0}', space=sflag, size = 0x4, scoped, tag = 'scoped memory for tpu_custom_call.1']
    #allocation4 [shape = 's32[1]{0}', space=sflag, size = 0x4, scoped, tag = 'scoped memory for tpu_custom_call.1']
    #allocation5 [shape = 'u8[16384]{0}', space=vmem, size = 0x4000, scoped, tag = 'input window, operand 1, single buffered']
    #allocation6 [shape = 's32[1]{0}', space=sflag, size = 0x4, scoped, tag = 'scoped memory for tpu_custom_call.1']
    #allocation7 [shape = 'u8[4096]{0}', space=vmem, size = 0x1000, scoped, tag = 'output window, operand 0, single buffered']
    %8 = vsyncpa [#allocation3], 0
    %9 = vsyncpa [#allocation6], 0
    %10 = vsyncpa [#allocation4], 0
    // Predicated region
    $region2: #{tpu_custom_call.1} parent=1 // pred_check
      _
    $region3: #{tpu_custom_call.1} parent=1 // pred_check_branch
      %12 = sbr.rel (0) target = $region5
    $region4: #{tpu_custom_call.1} parent=1 // pred_region
      %s14 = ssub.s32 256, 256
      %15 = vsyncadd [#allocation3], %s14
      %s16 = sshll.u32 [#allocation2], 4
      %s17 = int_to_ptr.vmem [resolvable:$true] %s16
      %22 = dma.hbm_to_vmem [thread:$0]  %s0, 256, %s17, [#allocation3], 128, 128, 8
    $region5: #{tpu_custom_call.1} parent=1 // pred_fallthru
      _
    // Predicated region
    $region6: #{tpu_custom_call.1} parent=1 // pred_check
      _
    $region7: #{tpu_custom_call.1} parent=1 // pred_check_branch
      %24 = sbr.rel (0) target = $region9
    $region8: #{tpu_custom_call.1} parent=1 // pred_region
      %s26 = ssub.s32 512, 512
      %27 = vsyncadd [#allocation6], %s26
      %s28 = sshll.u32 [#allocation5], 4
      %s29 = int_to_ptr.vmem [resolvable:$true] %s28
      %34 = dma.hbm_to_vmem [thread:$0]  %s1, 512, %s29, [#allocation6], 128, 128, 8
    $region9: #{tpu_custom_call.1} parent=1 // pred_fallthru
      _
    // Predicated region
    $region10: #{tpu_custom_call.1} parent=1 // pred_check
      _
    $region11: #{tpu_custom_call.1} parent=1 // pred_check_branch
      %36 = sbr.rel (0) target = $region13
    $region12: #{tpu_custom_call.1} parent=1 // pred_region
      _
    $region13: #{tpu_custom_call.1} parent=1 // pred_fallthru
      _
    // Predicated region
    $region14: #{tpu_custom_call.1} parent=1 // pred_check
      _
    $region15: #{tpu_custom_call.1} parent=1 // pred_check_branch
      %38 = sbr.rel (0) target = $region17
    $region16: #{tpu_custom_call.1} parent=1 // pred_region
      %39 = dma.done [#allocation3], 256
    $region17: #{tpu_custom_call.1} parent=1 // pred_fallthru
      _
    // Predicated region
    $region18: #{tpu_custom_call.1} parent=1 // pred_check
      _
    $region19: #{tpu_custom_call.1} parent=1 // pred_check_branch
      %41 = sbr.rel (0) target = $region21
    $region20: #{tpu_custom_call.1} parent=1 // pred_region
      %42 = dma.done [#allocation6], 512
    $region21: #{tpu_custom_call.1} parent=1 // pred_fallthru
      _
    %v44 = vld [vmem:[#allocation2] sm:$0xff]
    %v45 = vld [vmem:[#allocation2 + $0x8] sm:$0xff]
    %v46 = vpack.c.bf16 %v45, %v44
    %v47 = vld [vmem:[#allocation5] sm:$0xff]
    %v48 = vld [vmem:[#allocation5 + $0x8] sm:$0xff]
    %v49 = vld [vmem:[#allocation5 + $0x10] sm:$0xff]
    %v50 = vld [vmem:[#allocation5 + $0x18] sm:$0xff]
    %v51 = vpack.c.bf16 %v48, %v47
    %v52 = vpack.c.bf16 %v50, %v49
    %v53 = vld [vmem:[%s2] sm:$0x1]
    %v55 = vlaneseq
    %v56 = vshrl.u32 %v55, 7
    %v57 = vsub.s32 0, %v56
    %v58 = vrot.slane %v53, %v57
    %vm60 = vcmask 261120
    %v62 = vsel %vm60, %v46, 0
    %64 = vmatprep.subr.bf16.mxu0 0
    %65 = vmatpush1.bf16.msra.mxu0 %v51
    %66 = vmatprep.subr.bf16.mxu0 0
    %67 = vmatpush1.bf16.msra.mxu0 %v52
    %68 = vmatprep.subr.bf16.mxu0 0
    %69 = vmatpush1.bf16.msra.mxu0 0
    %70 = vmatprep.subr.bf16.mxu0 0
    %71 = vmatpush1.bf16.msra.mxu0 0
    %72 = vmatprep.subr.bf16.mxu0 0
    %73 = vmatpush1.bf16.msra.mxu0 0
    %74 = vmatprep.subr.bf16.mxu0 0
    %75 = vmatpush1.bf16.msra.mxu0 0
    %76 = vmatprep.subr.bf16.mxu0 0
    %77 = vmatpush1.bf16.msra.mxu0 0
    %78 = vmatprep.subr.bf16.mxu0 0
    %79 = vmatpush1.bf16.msra.mxu0 0
    %80 = vmatprep.subr.bf16.mxu0 0
    %81 = vmatpush1.bf16.msra.mxu0 0
    %82 = vmatprep.subr.bf16.mxu0 0
    %83 = vmatpush1.bf16.msra.mxu0 0
    %84 = vmatprep.subr.bf16.mxu0 0
    %85 = vmatpush1.bf16.msra.mxu0 0
    %86 = vmatprep.subr.bf16.mxu0 0
    %87 = vmatpush1.bf16.msra.mxu0 0
    %88 = vmatprep.subr.bf16.mxu0 0
    %89 = vmatpush1.bf16.msra.mxu0 0
    %90 = vmatprep.subr.bf16.mxu0 0
    %91 = vmatpush1.bf16.msra.mxu0 0
    %92 = vmatprep.subr.bf16.mxu0 0
    %93 = vmatpush1.bf16.msra.mxu0 0
    %94 = vmatprep.subr.bf16.mxu0 0
    %95 = vmatpush1.bf16.msra.mxu0 0
    %96 = vmatprep.mubr.bf16.mxu0 0
    %97 = vmatmul.mubr.bf16.gmra.mrb[0].mxu0 %v62
    %v98 = vpop.f32.mrb[0].mxu0
    %v99 = vadd.f32 %v58, %v98
    %v100 = vpop.f32.mrb[0].mxu0
    %v101 = vpop.f32.mrb[0].mxu0
    %v102 = vadd.f32 %v58, %v101
    %v103 = vpop.f32.mrb[0].mxu0
    %104 = vdwg.mxu0
    %v105 = vpack.c.bf16 %v102, %v99
    %v107 = vunpack.c.l.b16 %v105
    %v108 = vunpack.c.h.b16 %v105
    %v109 = vpack.c.b16 %v107, %v107
    %v110 = vpack.c.b16 %v108, %v108
    %vm113 = vcmask 781312
    %114 = vst.msk [vmem:[#allocation7] sm:$0xf] %vm113, %v109
    %115 = vst.msk [vmem:[#allocation7 + $0x4] sm:$0xf] %vm113, %v110
    // Predicated region
    $region22: #{tpu_custom_call.1} parent=1 // pred_check
      _
    $region23: #{tpu_custom_call.1} parent=1 // pred_check_branch
      %117 = sbr.rel (0) target = $region25
    $region24: #{tpu_custom_call.1} parent=1 // pred_region
      %s119 = ssub.s32 128, 128
      %120 = vsyncadd [#allocation4], %s119
      %s121 = sshll.u32 [#allocation7], 4
      %s122 = int_to_ptr.vmem [resolvable:$true] %s121
      %127 = dma.vmem_to_hbm [thread:$0]  %s122, 128, %s3, [#allocation4], 64, 64, 4
    $region25: #{tpu_custom_call.1} parent=1 // pred_fallthru
      _
    // Predicated region
    $region26: #{tpu_custom_call.1} parent=1 // pred_check
      _
    $region27: #{tpu_custom_call.1} parent=1 // pred_check_branch
      %129 = sbr.rel (0) target = $region29
    $region28: #{tpu_custom_call.1} parent=1 // pred_region
      %130 = dma.done [#allocation4], 128
    $region29: #{tpu_custom_call.1} parent=1 // pred_fallthru
      _
    %131 = vsyncpa [#allocation3], 1
    %132 = vsyncpa [#allocation6], 1
    %133 = vsyncpa [#allocation4], 1

</llo_original>
